<compile_context>
chip_gen: v6e
topology: v6e:2x2x1
jax: 0.10.0
libtpu: 0.0.40
codegen_flags: <defaults>
</compile_context>

<pallas_src>
import math

import jax
import jax.numpy as jnp
from jax.experimental import pallas as pl
from jax.experimental.pallas import tpu as pltpu


def _round_up(x: int, m: int) -> int:
    return (x + m - 1) // m * m


# ----------------------------- kernels -----------------------------

def _tokenizer_kernel_precise(x_ref, w_hi_ref, w_lo_ref, c_ref, o_ref):
    # x_ref:  (TB, K)    batch tile of numerical features (K-padded with zeros)
    # w_hi:   (K, T*D)   bf16-representable part of the block-expanded weight (f32 storage)
    # w_lo:   (K, T*D)   residual (w_exp - w_hi)
    # c_ref:  (1, T*D)   fused constant: token-0 weight row (x==1) + bias (zero row folded)
    # o_ref:  (TB, T*D)  lane-dense output slab
    #
    # Each DEFAULT-precision dot rounds its operands to bf16 on the MXU; splitting both
    # operands into hi/lo and summing three passes reproduces Precision.HIGH accuracy
    # (~1e-5 relative) using only ops guaranteed to lower.  The constant add stays on the
    # VPU in exact f32.
    x = x_ref[...]
    x_hi = x.astype(jnp.bfloat16).astype(jnp.float32)
    x_lo = x - x_hi
    acc = jnp.dot(x_hi, w_hi_ref[...], preferred_element_type=jnp.float32)
    acc = acc + jnp.dot(x_lo, w_hi_ref[...], preferred_element_type=jnp.float32)
    acc = acc + jnp.dot(x_hi, w_lo_ref[...], preferred_element_type=jnp.float32)
    o_ref[...] = (acc + c_ref[...]).astype(o_ref.dtype)


def _tokenizer_kernel_fast(x_ref, w_ref, c_ref, o_ref):
    # Single default-precision dot: operands rounded to bf16 (~1e-3 rel error), one MXU
    # pass -> the kernel stays cleanly HBM-writeback-bound at large batch tiles.
    acc = jnp.dot(x_ref[...], w_ref[...], preferred_element_type=jnp.float32)
    o_ref[...] = (acc + c_ref[...]).astype(o_ref.dtype)


# ------------------------- parameter prep (hoisted, one-time) -------------------------

def prepare_tokenizer_params(weight, bias):
    """One-time prep per (weight, bias); keep the result cached by the caller.

    weight: (d_numerical + 1, d_token);  bias: (d_numerical, d_token) or None.
    Fuses the ones column and zero bias row and block-expands the weight so the per-token
    scale becomes a single GEMM against a lane-dense (T*D) output.
    """
    T, D = weight.shape
    d_numerical = T - 1
    TD = T * D
    weight = weight.astype(jnp.float32)

    # Contraction dim padded to a multiple of 8 (sublane-friendly); padded rows are zero,
    # so they contribute nothing (zeros stay exactly zero through the hi/lo split too).
    K = max(8, _round_up(d_numerical, 8))
    W3 = jnp.zeros((K, T, D), jnp.float32)
    W3 = W3.at[jnp.arange(d_numerical), jnp.arange(1, T), :].set(weight[1:])
    w_exp = W3.reshape(K, TD)                                  # (K, T*D)
    w_hi = w_exp.astype(jnp.bfloat16).astype(jnp.float32)      # exactly bf16-representable
    w_lo = w_exp - w_hi                                        # residual for the HIGH path

    c3 = jnp.zeros((T, D), jnp.float32).at[0].set(weight[0])   # token 0: x == 1, bias == 0
    if bias is not None:
        c3 = c3.at[1:].set(bias.astype(jnp.float32))
    c_flat = c3.reshape(1, TD)                                 # (1, T*D)

    return {
        "w_exp": w_exp, "w_hi": w_hi, "w_lo": w_lo, "c_flat": c_flat,
        "d_numerical": d_numerical, "T": T, "D": D, "K": K,
    }


# ----------------------------- forward -----------------------------

def tokenizer_forward(x_num, params, *, block_b: int = 1024, min_grid_steps: int = 4,
                      out_dtype=jnp.float32, precise: bool = True):
    """Tokenizer forward.

    x_num:  (B, 1, d_numerical)
    params: result of prepare_tokenizer_params (hoisted one-time prep).
    returns (B, d_numerical + 1, d_token) in `out_dtype` (default float32).
    """
    B = x_num.shape[0]
    d_numerical, T, D, K = params["d_numerical"], params["T"], params["D"], params["K"]
    TD = T * D
    assert x_num.shape[-1] == d_numerical

    # Per-call prep: only the tiny K-axis pad for the contraction (no batch pad, no [:B]).
    x_sq = x_num.reshape(B, d_numerical).astype(jnp.float32)
    x_pad = jnp.pad(x_sq, ((0, 0), (0, K - d_numerical)))      # (B, K)

    # Batch-tile size: multiple of 8 (16 for sub-32-bit outputs), capped so the grid has at
    # least `min_grid_steps` steps when B allows it (v7x megacore + pipelining), and capped
    # by block_b (sweepable; 1024 -> ~2 MiB output blocks, 2048 still fits default VMEM).
    granule = 8 if jnp.dtype(out_dtype).itemsize >= 4 else 16
    tb = min(block_b, max(1, -(-B // min_grid_steps)))
    TB = max(granule, _round_up(tb, granule))
    grid = (pl.cdiv(B, TB),)                                   # partial edge tile is masked

    if precise:
        kernel = _tokenizer_kernel_precise
        weight_args = (params["w_hi"], params["w_lo"])
        n_passes = 3
    else:
        kernel = _tokenizer_kernel_fast
        weight_args = (params["w_exp"],)
        n_passes = 1
    w_specs = [pl.BlockSpec((K, TD), lambda i: (0, 0)) for _ in weight_args]

    out_bytes = B * TD * jnp.dtype(out_dtype).itemsize
    cost = pl.CostEstimate(
        flops=2 * B * K * TD * n_passes,
        transcendentals=0,
        bytes_accessed=B * K * 4 + len(weight_args) * K * TD * 4 + TD * 4 + out_bytes,
    )

    out_flat = pl.pallas_call(
        kernel,
        out_shape=jax.ShapeDtypeStruct((B, TD), out_dtype),
        grid_spec=pltpu.PrefetchScalarGridSpec(
            num_scalar_prefetch=0,
            grid=grid,
            in_specs=[
                pl.BlockSpec((TB, K), lambda i: (i, 0)),       # batch tile of features
                *w_specs,                                      # resident expanded weight(s)
                pl.BlockSpec((1, TD), lambda i: (0, 0)),       # fused constant row
            ],
            out_specs=pl.BlockSpec((TB, TD), lambda i: (i, 0)),  # lane-dense output slab
        ),
        compiler_params=pltpu.CompilerParams(
            dimension_semantics=("parallel",)),
        cost_estimate=cost,
    )(x_pad, *weight_args, params["c_flat"])

    # Contiguous unflatten of the token/feature axes (layout plumbing only).
    return out_flat.reshape(B, T, D)


def kaiming_uniform(key, shape, a=math.sqrt(5)):
    # PyTorch kaiming_uniform_ on a 2-D tensor: fan_in = shape[1]
    fan_in = shape[1]
    gain = math.sqrt(2.0 / (1.0 + a * a))
    bound = gain * math.sqrt(3.0 / fan_in)
    return jax.random.uniform(key, shape, jnp.float32, minval=-bound, maxval=bound)


if __name__ == "__main__":
    # Small shapes consistent with the module: batch=2, d_numerical=15, d_token=32,
    # categories=None, bias=True.
    B, d_numerical, d_token = 2, 15, 32
    T = d_numerical + 1

    key = jax.random.PRNGKey(0)
    k_w, k_b, k_x = jax.random.split(key, 3)

    weight = kaiming_uniform(k_w, (T, d_token))             # (d_numerical+1, d_token)
    bias = kaiming_uniform(k_b, (d_numerical, d_token))     # (d_bias, d_token)
    x_num = jax.random.normal(k_x, (B, 1, d_numerical), jnp.float32)

    # One-time parameter prep (hoisted off the per-call path; cache this).
    params = prepare_tokenizer_params(weight, bias)

    out = tokenizer_forward(x_num, params)                  # precise (HIGH-equivalent) path
    out = jax.block_until_ready(out)

    # Reference in plain JAX (same math as the PyTorch module, no Pallas).
    x_sq = x_num.reshape(B, d_numerical)
    x_ext = jnp.concatenate([jnp.ones((B, 1), jnp.float32), x_sq], axis=1)
    bias_ext = jnp.concatenate([jnp.zeros((1, d_token), jnp.float32), bias], axis=0)
    ref = weight[None] * x_ext[:, :, None] + bias_ext[None]

    assert out.shape == (B, T, d_token), out.shape
    max_err = float(jnp.max(jnp.abs(out - ref)))
    assert jnp.allclose(out, ref, rtol=1e-3, atol=1e-4), f"precise max_abs_err={max_err}"

    # Also exercise the single-pass, purely write-bound variant (bf16-rounded operands).
    out_fast = jax.block_until_ready(tokenizer_forward(x_num, params, precise=False))
    max_err_fast = float(jnp.max(jnp.abs(out_fast - ref)))
    assert jnp.allclose(out_fast, ref, rtol=2e-2, atol=1e-3), f"fast max_abs_err={max_err_fast}"

    print("KERNEL_OK")
</pallas_src>

<mosaic_0001>
module attributes {stable_mosaic.version = 11 : i64} {
  func.func @_tokenizer_kernel_precise(%arg0: i32, %arg1: memref<8x16xf32, #tpu.memory_space<vmem>>, %arg2: memref<16x512xf32, #tpu.memory_space<vmem>>, %arg3: memref<16x512xf32, #tpu.memory_space<vmem>>, %arg4: memref<1x512xf32, #tpu.memory_space<vmem>>, %arg5: memref<8x512xf32, #tpu.memory_space<vmem>>) attributes {dimension_semantics = [#tpu.dimension_semantics<parallel>], iteration_bounds = array<i64: 1>, scalar_prefetch = 0 : i64, scratch_operands = 0 : i64, tpu.core_type = #tpu.core_type<tc>, window_params = [{transform_indices = @transform_0, window_bounds = array<i64: 8, 16>}, {pipeline_mode = #tpu.pipeline_mode<synchronous>, transform_indices = @transform_1, window_bounds = array<i64: 16, 512>}, {pipeline_mode = #tpu.pipeline_mode<synchronous>, transform_indices = @transform_2, window_bounds = array<i64: 16, 512>}, {pipeline_mode = #tpu.pipeline_mode<synchronous>, transform_indices = @transform_3, window_bounds = array<i64: 1, 512>}, {transform_indices = @transform_4, window_bounds = array<i64: 8, 512>}]} {
    %c0 = arith.constant 0 : index
    %c0_0 = arith.constant 0 : index
    %0 = vector.load %arg1[%c0, %c0_0] : memref<8x16xf32, #tpu.memory_space<vmem>>, vector<8x16xf32>
    %1 = arith.truncf %0 : vector<8x16xf32> to vector<8x16xbf16>
    %2 = arith.extf %1 : vector<8x16xbf16> to vector<8x16xf32>
    %3 = arith.subf %0, %2 : vector<8x16xf32>
    %c0_1 = arith.constant 0 : index
    %c0_2 = arith.constant 0 : index
    %4 = vector.load %arg2[%c0_1, %c0_2] : memref<16x512xf32, #tpu.memory_space<vmem>>, vector<16x512xf32>
    %cst = arith.constant dense<0.000000e+00> : vector<8x512xf32>
    %5 = tpu.matmul %2, %4, %cst {dimension_numbers = #tpu.dot_dimension_numbers<[1], [0], [0], [1], [0, 0, 1, 1], [], []>} : vector<8x16xf32>, vector<16x512xf32>, vector<8x512xf32> -> vector<8x512xf32>
    %c0_3 = arith.constant 0 : index
    %c0_4 = arith.constant 0 : index
    %6 = vector.load %arg2[%c0_3, %c0_4] : memref<16x512xf32, #tpu.memory_space<vmem>>, vector<16x512xf32>
    %cst_5 = arith.constant dense<0.000000e+00> : vector<8x512xf32>
    %7 = tpu.matmul %3, %6, %cst_5 {dimension_numbers = #tpu.dot_dimension_numbers<[1], [0], [0], [1], [0, 0, 1, 1], [], []>} : vector<8x16xf32>, vector<16x512xf32>, vector<8x512xf32> -> vector<8x512xf32>
    %8 = arith.addf %5, %7 : vector<8x512xf32>
    %c0_6 = arith.constant 0 : index
    %c0_7 = arith.constant 0 : index
    %9 = vector.load %arg3[%c0_6, %c0_7] : memref<16x512xf32, #tpu.memory_space<vmem>>, vector<16x512xf32>
    %cst_8 = arith.constant dense<0.000000e+00> : vector<8x512xf32>
    %10 = tpu.matmul %2, %9, %cst_8 {dimension_numbers = #tpu.dot_dimension_numbers<[1], [0], [0], [1], [0, 0, 1, 1], [], []>} : vector<8x16xf32>, vector<16x512xf32>, vector<8x512xf32> -> vector<8x512xf32>
    %11 = arith.addf %8, %10 : vector<8x512xf32>
    %c0_9 = arith.constant 0 : index
    %c0_10 = arith.constant 0 : index
    %12 = vector.load %arg4[%c0_9, %c0_10] : memref<1x512xf32, #tpu.memory_space<vmem>>, vector<1x512xf32>
    %13 = vector.broadcast %12 : vector<1x512xf32> to vector<8x512xf32>
    %14 = arith.addf %11, %13 : vector<8x512xf32>
    %c0_11 = arith.constant 0 : index
    %c0_12 = arith.constant 0 : index
    %15 = vector.load %arg5[%c0_11, %c0_12] : memref<8x512xf32, #tpu.memory_space<vmem>>, vector<8x512xf32>
    tpu.vector_store %arg5[%c0_11, %c0_12], %14 {strides = array<i32>} : memref<8x512xf32, #tpu.memory_space<vmem>>, vector<8x512xf32>,
    return
  }
  func.func @transform_0(%arg0: i32) -> (i32, i32) {
    %c0_i32 = arith.constant 0 : i32
    %c0_i32_0 = arith.constant 0 : i32
    return %arg0, %c0_i32 : i32, i32
  }
  func.func @transform_1(%arg0: i32) -> (i32, i32) {
    %c0_i32 = arith.constant 0 : i32
    %c0_i32_0 = arith.constant 0 : i32
    %c0_i32_1 = arith.constant 0 : i32
    return %c0_i32, %c0_i32_0 : i32, i32
  }
  func.func @transform_2(%arg0: i32) -> (i32, i32) {
    %c0_i32 = arith.constant 0 : i32
    %c0_i32_0 = arith.constant 0 : i32
    %c0_i32_1 = arith.constant 0 : i32
    return %c0_i32, %c0_i32_0 : i32, i32
  }
  func.func @transform_3(%arg0: i32) -> (i32, i32) {
    %c0_i32 = arith.constant 0 : i32
    %c0_i32_0 = arith.constant 0 : i32
    %c0_i32_1 = arith.constant 0 : i32
    return %c0_i32, %c0_i32_0 : i32, i32
  }
  func.func @transform_4(%arg0: i32) -> (i32, i32) {
    %c0_i32 = arith.constant 0 : i32
    %c0_i32_0 = arith.constant 0 : i32
    return %arg0, %c0_i32 : i32, i32
  }
}

</mosaic_0001>

<llo_original>
// kernel: tpu_custom_call.1
$region0: #{tpu_custom_call.1}
  #allocation0 [shape = 'u32[]', space=smem, size = 0x4, offset = 0x4, fixed_abs, tag = 'smem constant byte address 0x4 - core index']
  #allocation1 [shape = 'u32[144,128]{1,0:T(1,128)}', space=vmem, size = 0x12000, scoped, tag = 'internal scratch']
  %s0 = inlined_call_operand.hbm [shape: f32[2,16], index: 0, kind: input, shape index: {}]
  %s1 = inlined_call_operand.hbm [shape: f32[16,512], index: 1, kind: input, shape index: {}]
  %s2 = inlined_call_operand.hbm [shape: f32[16,512], index: 2, kind: input, shape index: {}]
  %s3 = inlined_call_operand.vmem [shape: f32[1,512], index: 3, kind: input, shape index: {}]
  %s4 = inlined_call_operand.hbm [shape: f32[2,512], index: 4, kind: output, shape index: {}]
  %s5 = sld [smem:[#allocation0]]
  $region38: #{tpu_custom_call.1} parent=0
    _
  %s7 = ssub.s32 1, %s5
  %s8 = scalar_select 0, %s7, %s5
  $region1: #{tpu_custom_call.1} parent=0
    #allocation2 [shape = 'u8[4096]{0}', space=vmem, size = 0x1000, scoped, tag = 'input window, operand 0, single buffered']
    #allocation3 [shape = 's32[1]{0}', space=sflag, size = 0x4, scoped, tag = 'scoped memory for tpu_custom_call.1']
    #allocation4 [shape = 's32[1]{0}', space=sflag, size = 0x4, scoped, tag = 'scoped memory for tpu_custom_call.1']
    #allocation5 [shape = 'u8[32768]{0}', space=vmem, size = 0x8000, scoped, tag = 'input window, operand 1, single buffered']
    #allocation6 [shape = 's32[1]{0}', space=sflag, size = 0x4, scoped, tag = 'scoped memory for tpu_custom_call.1']
    #allocation7 [shape = 'u8[32768]{0}', space=vmem, size = 0x8000, scoped, tag = 'input window, operand 2, single buffered']
    #allocation8 [shape = 'u8[16384]{0}', space=vmem, size = 0x4000, scoped, tag = 'output window, operand 0, single buffered']
    %9 = vsyncpa [#allocation3], 0
    %10 = vsyncpa [#allocation6], 0
    %11 = vsyncpa [#allocation4], 0
    // Predicated region
    $region2: #{tpu_custom_call.1} parent=1 // pred_check
      _
    $region3: #{tpu_custom_call.1} parent=1 // pred_check_branch
      %13 = sbr.rel (0) target = $region5
    $region4: #{tpu_custom_call.1} parent=1 // pred_region
      %s15 = ssub.s32 128, 32
      %16 = vsyncadd [#allocation3], %s15
      %s17 = sshll.u32 [#allocation2], 4
      %s18 = int_to_ptr.vmem [resolvable:$true] %s17
      %23 = dma.hbm_to_vmem [thread:$0]  %s0, 32, %s18, [#allocation3], 32, 32, 2
    $region5: #{tpu_custom_call.1} parent=1 // pred_fallthru
      _
    // Predicated region
    $region6: #{tpu_custom_call.1} parent=1 // pred_check
      _
    $region7: #{tpu_custom_call.1} parent=1 // pred_check_branch
      %25 = sbr.rel (0) target = $region9
    $region8: #{tpu_custom_call.1} parent=1 // pred_region
      %s27 = ssub.s32 1024, 1024
      %28 = vsyncadd [#allocation6], %s27
      %s29 = sshll.u32 [#allocation5], 4
      %s30 = int_to_ptr.vmem [resolvable:$true] %s29
      %35 = dma.hbm_to_vmem [thread:$0]  %s1, 1024, %s30, [#allocation6], 512, 512, 32
    $region9: #{tpu_custom_call.1} parent=1 // pred_fallthru
      _
    // Predicated region
    $region10: #{tpu_custom_call.1} parent=1 // pred_check
      _
    $region11: #{tpu_custom_call.1} parent=1 // pred_check_branch
      %37 = sbr.rel (0) target = $region13
    $region12: #{tpu_custom_call.1} parent=1 // pred_region
      %s39 = ssub.s32 1024, 1024
      %40 = vsyncadd [#allocation6], %s39
      %s41 = sshll.u32 [#allocation7], 4
      %s42 = int_to_ptr.vmem [resolvable:$true] %s41
      %47 = dma.hbm_to_vmem [thread:$0]  %s2, 1024, %s42, [#allocation6], 512, 512, 32
    $region13: #{tpu_custom_call.1} parent=1 // pred_fallthru
      _
    // Predicated region
    $region14: #{tpu_custom_call.1} parent=1 // pred_check
      _
    $region15: #{tpu_custom_call.1} parent=1 // pred_check_branch
      %49 = sbr.rel (0) target = $region17
    $region16: #{tpu_custom_call.1} parent=1 // pred_region
      _
    $region17: #{tpu_custom_call.1} parent=1 // pred_fallthru
      _
    // Predicated region
    $region18: #{tpu_custom_call.1} parent=1 // pred_check
      _
    $region19: #{tpu_custom_call.1} parent=1 // pred_check_branch
      %51 = sbr.rel (0) target = $region21
    $region20: #{tpu_custom_call.1} parent=1 // pred_region
      %52 = dma.done [#allocation3], 128
    $region21: #{tpu_custom_call.1} parent=1 // pred_fallthru
      _
    // Predicated region
    $region22: #{tpu_custom_call.1} parent=1 // pred_check
      _
    $region23: #{tpu_custom_call.1} parent=1 // pred_check_branch
      %54 = sbr.rel (0) target = $region25
    $region24: #{tpu_custom_call.1} parent=1 // pred_region
      %55 = dma.done [#allocation6], 1024
    $region25: #{tpu_custom_call.1} parent=1 // pred_fallthru
      _
    // Predicated region
    $region26: #{tpu_custom_call.1} parent=1 // pred_check
      _
    $region27: #{tpu_custom_call.1} parent=1 // pred_check_branch
      %57 = sbr.rel (0) target = $region29
    $region28: #{tpu_custom_call.1} parent=1 // pred_region
      %58 = dma.done [#allocation6], 1024
    $region29: #{tpu_custom_call.1} parent=1 // pred_fallthru
      _
    %v59 = vld [vmem:[#allocation2] sm:$0xff]
    %v60 = vpack.c.bf16 %v59, %v59
    %v61 = vunpack.c.l.bf16 %v60
    %v62 = vsub.f32 %v59, %v61
    %v63 = vld [vmem:[#allocation5] sm:$0xff]
    %v64 = vld [vmem:[#allocation5 + $0x8] sm:$0xff]
    %v65 = vld [vmem:[#allocation5 + $0x10] sm:$0xff]
    %v66 = vld [vmem:[#allocation5 + $0x18] sm:$0xff]
    %v67 = vld [vmem:[#allocation5 + $0x20] sm:$0xff]
    %v68 = vld [vmem:[#allocation5 + $0x28] sm:$0xff]
    %v69 = vld [vmem:[#allocation5 + $0x30] sm:$0xff]
    %v70 = vld [vmem:[#allocation5 + $0x38] sm:$0xff]
    %vm71 = vcmask 130048
    %v73 = vsel %vm71, %v62, 0
    %75 = vmatprep.subr.mxu0 0.0
    %76 = vmatpush1.msra.mxu0 0.0
    %77 = vmatprep.subr.mxu0 0.0
    %78 = vmatpush1.msra.mxu0 0.0
    %79 = vmatprep.subr.mxu0 0.0
    %80 = vmatpush1.msra.mxu0 0.0
    %81 = vmatprep.subr.mxu0 0.0
    %82 = vmatpush1.msra.mxu0 0.0
    %83 = vmatprep.subr.mxu0 0.0
    %84 = vmatpush1.msra.mxu0 0.0
    %85 = vmatprep.subr.mxu0 0.0
    %86 = vmatpush1.msra.mxu0 0.0
    %87 = vmatprep.subr.mxu0 0.0
    %88 = vmatpush1.msra.mxu0 0.0
    %89 = vmatprep.subr.mxu0 0.0
    %90 = vmatpush1.msra.mxu0 0.0
    %91 = vmatprep.subr.mxu0 0.0
    %92 = vmatpush1.msra.mxu0 0.0
    %93 = vmatprep.subr.mxu0 0.0
    %94 = vmatpush1.msra.mxu0 0.0
    %95 = vmatprep.subr.mxu0 0.0
    %96 = vmatpush1.msra.mxu0 0.0
    %97 = vmatprep.subr.mxu0 0.0
    %98 = vmatpush1.msra.mxu0 0.0
    %99 = vmatprep.subr.mxu0 0.0
    %100 = vmatpush1.msra.mxu0 0.0
    %101 = vmatprep.subr.mxu0 0.0
    %102 = vmatpush1.msra.mxu0 0.0
    %103 = vmatprep.subr.mxu0 %v68
    %104 = vmatpush1.msra.mxu0 %v67
    %105 = vmatprep.subr.mxu0 %v64
    %106 = vmatpush1.msra.mxu0 %v63
    %107 = vmatprep.subr.mxu0 0.0
    %108 = vmatpush2.msra.mxu0 0.0
    %109 = vmatprep.subr.mxu0 0.0
    %110 = vmatpush2.msra.mxu0 0.0
    %111 = vmatprep.subr.mxu0 0.0
    %112 = vmatpush2.msra.mxu0 0.0
    %113 = vmatprep.subr.mxu0 0.0
    %114 = vmatpush2.msra.mxu0 0.0
    %115 = vmatprep.subr.mxu0 0.0
    %116 = vmatpush2.msra.mxu0 0.0
    %117 = vmatprep.subr.mxu0 0.0
    %118 = vmatpush2.msra.mxu0 0.0
    %119 = vmatprep.subr.mxu0 0.0
    %120 = vmatpush2.msra.mxu0 0.0
    %121 = vmatprep.subr.mxu0 0.0
    %122 = vmatpush2.msra.mxu0 0.0
    %123 = vmatprep.subr.mxu0 0.0
    %124 = vmatpush2.msra.mxu0 0.0
    %125 = vmatprep.subr.mxu0 0.0
    %126 = vmatpush2.msra.mxu0 0.0
    %127 = vmatprep.subr.mxu0 0.0
    %128 = vmatpush2.msra.mxu0 0.0
    %129 = vmatprep.subr.mxu0 0.0
    %130 = vmatpush2.msra.mxu0 0.0
    %131 = vmatprep.subr.mxu0 0.0
    %132 = vmatpush2.msra.mxu0 0.0
    %133 = vmatprep.subr.mxu0 0.0
    %134 = vmatpush2.msra.mxu0 0.0
    %135 = vmatprep.subr.mxu0 0.0
    %136 = vmatpush2.msra.mxu0 0.0
    %137 = vmatprep.subr.mxu0 0.0
    %138 = vmatpush2.msra.mxu0 0.0
    %139 = vmatprep.mubr.f32.mxu0 0.0
    %140 = vmatmul.mubr.f32.gmra.mxu0 %v73
    %v141 = vpop.f32.mrf.mxu0
    %v142 = vadd.f32 0.0, %v141
    %v143 = vpop.f32.mrf.mxu0
    %v144 = vadd.f32 0.0, %v143
    %145 = vdwg.mxu0
    %146 = vmatprep.subr.mxu0 0.0
    %147 = vmatpush1.msra.mxu0 0.0
    %148 = vmatprep.subr.mxu0 0.0
    %149 = vmatpush1.msra.mxu0 0.0
    %150 = vmatprep.subr.mxu0 0.0
    %151 = vmatpush1.msra.mxu0 0.0
    %152 = vmatprep.subr.mxu0 0.0
    %153 = vmatpush1.msra.mxu0 0.0
    %154 = vmatprep.subr.mxu0 0.0
    %155 = vmatpush1.msra.mxu0 0.0
    %156 = vmatprep.subr.mxu0 0.0
    %157 = vmatpush1.msra.mxu0 0.0
    %158 = vmatprep.subr.mxu0 0.0
    %159 = vmatpush1.msra.mxu0 0.0
    %160 = vmatprep.subr.mxu0 0.0
    %161 = vmatpush1.msra.mxu0 0.0
    %162 = vmatprep.subr.mxu0 0.0
    %163 = vmatpush1.msra.mxu0 0.0
    %164 = vmatprep.subr.mxu0 0.0
    %165 = vmatpush1.msra.mxu0 0.0
    %166 = vmatprep.subr.mxu0 0.0
    %167 = vmatpush1.msra.mxu0 0.0
    %168 = vmatprep.subr.mxu0 0.0
    %169 = vmatpush1.msra.mxu0 0.0
    %170 = vmatprep.subr.mxu0 0.0
    %171 = vmatpush1.msra.mxu0 0.0
    %172 = vmatprep.subr.mxu0 0.0
    %173 = vmatpush1.msra.mxu0 0.0
    %174 = vmatprep.subr.mxu0 %v70
    %175 = vmatpush1.msra.mxu0 %v69
    %176 = vmatprep.subr.mxu0 %v66
    %177 = vmatpush1.msra.mxu0 %v65
    %178 = vmatprep.subr.mxu0 0.0
    %179 = vmatpush2.msra.mxu0 0.0
    %180 = vmatprep.subr.mxu0 0.0
    %181 = vmatpush2.msra.mxu0 0.0
    %182 = vmatprep.subr.mxu0 0.0
    %183 = vmatpush2.msra.mxu0 0.0
    %184 = vmatprep.subr.mxu0 0.0
    %185 = vmatpush2.msra.mxu0 0.0
    %186 = vmatprep.subr.mxu0 0.0
    %187 = vmatpush2.msra.mxu0 0.0
    %188 = vmatprep.subr.mxu0 0.0
    %189 = vmatpush2.msra.mxu0 0.0
    %190 = vmatprep.subr.mxu0 0.0
    %191 = vmatpush2.msra.mxu0 0.0
    %192 = vmatprep.subr.mxu0 0.0
    %193 = vmatpush2.msra.mxu0 0.0
    %194 = vmatprep.subr.mxu0 0.0
    %195 = vmatpush2.msra.mxu0 0.0
    %196 = vmatprep.subr.mxu0 0.0
    %197 = vmatpush2.msra.mxu0 0.0
    %198 = vmatprep.subr.mxu0 0.0
    %199 = vmatpush2.msra.mxu0 0.0
    %200 = vmatprep.subr.mxu0 0.0
    %201 = vmatpush2.msra.mxu0 0.0
    %202 = vmatprep.subr.mxu0 0.0
    %203 = vmatpush2.msra.mxu0 0.0
    %204 = vmatprep.subr.mxu0 0.0
    %205 = vmatpush2.msra.mxu0 0.0
    %206 = vmatprep.subr.mxu0 0.0
    %207 = vmatpush2.msra.mxu0 0.0
    %208 = vmatprep.subr.mxu0 0.0
    %209 = vmatpush2.msra.mxu0 0.0
    %210 = vmatprep.mubr.f32.mxu0 0.0
    %211 = vmatmul.mubr.f32.gmra.mxu0 %v73
    %v212 = vpop.f32.mrf.mxu0
    %v213 = vadd.f32 0.0, %v212
    %v214 = vpop.f32.mrf.mxu0
    %v215 = vadd.f32 0.0, %v214
    %216 = vdwg.mxu0
    %v218 = vsel %vm71, %v61, 0
    %220 = vmatprep.subr.mxu0 0.0
    %221 = vmatpush1.msra.mxu0 0.0
    %222 = vmatprep.subr.mxu0 0.0
    %223 = vmatpush1.msra.mxu0 0.0
    %224 = vmatprep.subr.mxu0 0.0
    %225 = vmatpush1.msra.mxu0 0.0
    %226 = vmatprep.subr.mxu0 0.0
    %227 = vmatpush1.msra.mxu0 0.0
    %228 = vmatprep.subr.mxu0 0.0
    %229 = vmatpush1.msra.mxu0 0.0
    %230 = vmatprep.subr.mxu0 0.0
    %231 = vmatpush1.msra.mxu0 0.0
    %232 = vmatprep.subr.mxu0 0.0
    %233 = vmatpush1.msra.mxu0 0.0
    %234 = vmatprep.subr.mxu0 0.0
    %235 = vmatpush1.msra.mxu0 0.0
    %236 = vmatprep.subr.mxu0 0.0
    %237 = vmatpush1.msra.mxu0 0.0
    %238 = vmatprep.subr.mxu0 0.0
    %239 = vmatpush1.msra.mxu0 0.0
    %240 = vmatprep.subr.mxu0 0.0
    %241 = vmatpush1.msra.mxu0 0.0
    %242 = vmatprep.subr.mxu0 0.0
    %243 = vmatpush1.msra.mxu0 0.0
    %244 = vmatprep.subr.mxu0 0.0
    %245 = vmatpush1.msra.mxu0 0.0
    %246 = vmatprep.subr.mxu0 0.0
    %247 = vmatpush1.msra.mxu0 0.0
    %248 = vmatprep.subr.mxu0 %v68
    %249 = vmatpush1.msra.mxu0 %v67
    %250 = vmatprep.subr.mxu0 %v64
    %251 = vmatpush1.msra.mxu0 %v63
    %252 = vmatprep.subr.mxu0 0.0
    %253 = vmatpush2.msra.mxu0 0.0
    %254 = vmatprep.subr.mxu0 0.0
    %255 = vmatpush2.msra.mxu0 0.0
    %256 = vmatprep.subr.mxu0 0.0
    %257 = vmatpush2.msra.mxu0 0.0
    %258 = vmatprep.subr.mxu0 0.0
    %259 = vmatpush2.msra.mxu0 0.0
    %260 = vmatprep.subr.mxu0 0.0
    %261 = vmatpush2.msra.mxu0 0.0
    %262 = vmatprep.subr.mxu0 0.0
    %263 = vmatpush2.msra.mxu0 0.0
    %264 = vmatprep.subr.mxu0 0.0
    %265 = vmatpush2.msra.mxu0 0.0
    %266 = vmatprep.subr.mxu0 0.0
    %267 = vmatpush2.msra.mxu0 0.0
    %268 = vmatprep.subr.mxu0 0.0
    %269 = vmatpush2.msra.mxu0 0.0
    %270 = vmatprep.subr.mxu0 0.0
    %271 = vmatpush2.msra.mxu0 0.0
    %272 = vmatprep.subr.mxu0 0.0
    %273 = vmatpush2.msra.mxu0 0.0
    %274 = vmatprep.subr.mxu0 0.0
    %275 = vmatpush2.msra.mxu0 0.0
    %276 = vmatprep.subr.mxu0 0.0
    %277 = vmatpush2.msra.mxu0 0.0
    %278 = vmatprep.subr.mxu0 0.0
    %279 = vmatpush2.msra.mxu0 0.0
    %280 = vmatprep.subr.mxu0 0.0
    %281 = vmatpush2.msra.mxu0 0.0
    %282 = vmatprep.subr.mxu0 0.0
    %283 = vmatpush2.msra.mxu0 0.0
    %284 = vmatprep.mubr.f32.mxu0 0.0
    %285 = vmatmul.mubr.f32.gmra.mxu0 %v218
    %v286 = vpop.f32.mrf.mxu0
    %v287 = vadd.f32 %v142, %v286
    %v288 = vpop.f32.mrf.mxu0
    %v289 = vadd.f32 %v144, %v288
    %290 = vdwg.mxu0
    %291 = vmatprep.subr.mxu0 0.0
    %292 = vmatpush1.msra.mxu0 0.0
    %293 = vmatprep.subr.mxu0 0.0
    %294 = vmatpush1.msra.mxu0 0.0
    %295 = vmatprep.subr.mxu0 0.0
    %296 = vmatpush1.msra.mxu0 0.0
    %297 = vmatprep.subr.mxu0 0.0
    %298 = vmatpush1.msra.mxu0 0.0
    %299 = vmatprep.subr.mxu0 0.0
    %300 = vmatpush1.msra.mxu0 0.0
    %301 = vmatprep.subr.mxu0 0.0
    %302 = vmatpush1.msra.mxu0 0.0
    %303 = vmatprep.subr.mxu0 0.0
    %304 = vmatpush1.msra.mxu0 0.0
    %305 = vmatprep.subr.mxu0 0.0
    %306 = vmatpush1.msra.mxu0 0.0
    %307 = vmatprep.subr.mxu0 0.0
    %308 = vmatpush1.msra.mxu0 0.0
    %309 = vmatprep.subr.mxu0 0.0
    %310 = vmatpush1.msra.mxu0 0.0
    %311 = vmatprep.subr.mxu0 0.0
    %312 = vmatpush1.msra.mxu0 0.0
    %313 = vmatprep.subr.mxu0 0.0
    %314 = vmatpush1.msra.mxu0 0.0
    %315 = vmatprep.subr.mxu0 0.0
    %316 = vmatpush1.msra.mxu0 0.0
    %317 = vmatprep.subr.mxu0 0.0
    %318 = vmatpush1.msra.mxu0 0.0
    %319 = vmatprep.subr.mxu0 %v70
    %320 = vmatpush1.msra.mxu0 %v69
    %321 = vmatprep.subr.mxu0 %v66
    %322 = vmatpush1.msra.mxu0 %v65
    %323 = vmatprep.subr.mxu0 0.0
    %324 = vmatpush2.msra.mxu0 0.0
    %325 = vmatprep.subr.mxu0 0.0
    %326 = vmatpush2.msra.mxu0 0.0
    %327 = vmatprep.subr.mxu0 0.0
    %328 = vmatpush2.msra.mxu0 0.0
    %329 = vmatprep.subr.mxu0 0.0
    %330 = vmatpush2.msra.mxu0 0.0
    %331 = vmatprep.subr.mxu0 0.0
    %332 = vmatpush2.msra.mxu0 0.0
    %333 = vmatprep.subr.mxu0 0.0
    %334 = vmatpush2.msra.mxu0 0.0
    %335 = vmatprep.subr.mxu0 0.0
    %336 = vmatpush2.msra.mxu0 0.0
    %337 = vmatprep.subr.mxu0 0.0
    %338 = vmatpush2.msra.mxu0 0.0
    %339 = vmatprep.subr.mxu0 0.0
    %340 = vmatpush2.msra.mxu0 0.0
    %341 = vmatprep.subr.mxu0 0.0
    %342 = vmatpush2.msra.mxu0 0.0
    %343 = vmatprep.subr.mxu0 0.0
    %344 = vmatpush2.msra.mxu0 0.0
    %345 = vmatprep.subr.mxu0 0.0
    %346 = vmatpush2.msra.mxu0 0.0
    %347 = vmatprep.subr.mxu0 0.0
    %348 = vmatpush2.msra.mxu0 0.0
    %349 = vmatprep.subr.mxu0 0.0
    %350 = vmatpush2.msra.mxu0 0.0
    %351 = vmatprep.subr.mxu0 0.0
    %352 = vmatpush2.msra.mxu0 0.0
    %353 = vmatprep.subr.mxu0 0.0
    %354 = vmatpush2.msra.mxu0 0.0
    %355 = vmatprep.mubr.f32.mxu0 0.0
    %356 = vmatmul.mubr.f32.gmra.mxu0 %v218
    %v357 = vpop.f32.mrf.mxu0
    %v358 = vadd.f32 %v213, %v357
    %v359 = vpop.f32.mrf.mxu0
    %v360 = vadd.f32 %v215, %v359
    %361 = vdwg.mxu0
    %v362 = vld [vmem:[#allocation7] sm:$0xff]
    %v363 = vld [vmem:[#allocation7 + $0x8] sm:$0xff]
    %v364 = vld [vmem:[#allocation7 + $0x10] sm:$0xff]
    %v365 = vld [vmem:[#allocation7 + $0x18] sm:$0xff]
    %v366 = vld [vmem:[#allocation7 + $0x20] sm:$0xff]
    %v367 = vld [vmem:[#allocation7 + $0x28] sm:$0xff]
    %v368 = vld [vmem:[#allocation7 + $0x30] sm:$0xff]
    %v369 = vld [vmem:[#allocation7 + $0x38] sm:$0xff]
    %370 = vmatprep.subr.mxu0 0.0
    %371 = vmatpush1.msra.mxu0 0.0
    %372 = vmatprep.subr.mxu0 0.0
    %373 = vmatpush1.msra.mxu0 0.0
    %374 = vmatprep.subr.mxu0 0.0
    %375 = vmatpush1.msra.mxu0 0.0
    %376 = vmatprep.subr.mxu0 0.0
    %377 = vmatpush1.msra.mxu0 0.0
    %378 = vmatprep.subr.mxu0 0.0
    %379 = vmatpush1.msra.mxu0 0.0
    %380 = vmatprep.subr.mxu0 0.0
    %381 = vmatpush1.msra.mxu0 0.0
    %382 = vmatprep.subr.mxu0 0.0
    %383 = vmatpush1.msra.mxu0 0.0
    %384 = vmatprep.subr.mxu0 0.0
    %385 = vmatpush1.msra.mxu0 0.0
    %386 = vmatprep.subr.mxu0 0.0
    %387 = vmatpush1.msra.mxu0 0.0
    %388 = vmatprep.subr.mxu0 0.0
    %389 = vmatpush1.msra.mxu0 0.0
    %390 = vmatprep.subr.mxu0 0.0
    %391 = vmatpush1.msra.mxu0 0.0
    %392 = vmatprep.subr.mxu0 0.0
    %393 = vmatpush1.msra.mxu0 0.0
    %394 = vmatprep.subr.mxu0 0.0
    %395 = vmatpush1.msra.mxu0 0.0
    %396 = vmatprep.subr.mxu0 0.0
    %397 = vmatpush1.msra.mxu0 0.0
    %398 = vmatprep.subr.mxu0 %v367
    %399 = vmatpush1.msra.mxu0 %v366
    %400 = vmatprep.subr.mxu0 %v363
    %401 = vmatpush1.msra.mxu0 %v362
    %402 = vmatprep.subr.mxu0 0.0
    %403 = vmatpush2.msra.mxu0 0.0
    %404 = vmatprep.subr.mxu0 0.0
    %405 = vmatpush2.msra.mxu0 0.0
    %406 = vmatprep.subr.mxu0 0.0
    %407 = vmatpush2.msra.mxu0 0.0
    %408 = vmatprep.subr.mxu0 0.0
    %409 = vmatpush2.msra.mxu0 0.0
    %410 = vmatprep.subr.mxu0 0.0
    %411 = vmatpush2.msra.mxu0 0.0
    %412 = vmatprep.subr.mxu0 0.0
    %413 = vmatpush2.msra.mxu0 0.0
    %414 = vmatprep.subr.mxu0 0.0
    %415 = vmatpush2.msra.mxu0 0.0
    %416 = vmatprep.subr.mxu0 0.0
    %417 = vmatpush2.msra.mxu0 0.0
    %418 = vmatprep.subr.mxu0 0.0
    %419 = vmatpush2.msra.mxu0 0.0
    %420 = vmatprep.subr.mxu0 0.0
    %421 = vmatpush2.msra.mxu0 0.0
    %422 = vmatprep.subr.mxu0 0.0
    %423 = vmatpush2.msra.mxu0 0.0
    %424 = vmatprep.subr.mxu0 0.0
    %425 = vmatpush2.msra.mxu0 0.0
    %426 = vmatprep.subr.mxu0 0.0
    %427 = vmatpush2.msra.mxu0 0.0
    %428 = vmatprep.subr.mxu0 0.0
    %429 = vmatpush2.msra.mxu0 0.0
    %430 = vmatprep.subr.mxu0 0.0
    %431 = vmatpush2.msra.mxu0 0.0
    %432 = vmatprep.subr.mxu0 0.0
    %433 = vmatpush2.msra.mxu0 0.0
    %434 = vmatprep.mubr.f32.mxu0 0.0
    %435 = vmatmul.mubr.f32.gmra.mxu0 %v218
    %v436 = vpop.f32.mrf.mxu0
    %v437 = vadd.f32 0.0, %v436
    %v438 = vpop.f32.mrf.mxu0
    %v439 = vadd.f32 0.0, %v438
    %440 = vdwg.mxu0
    %441 = vmatprep.subr.mxu0 0.0
    %442 = vmatpush1.msra.mxu0 0.0
    %443 = vmatprep.subr.mxu0 0.0
    %444 = vmatpush1.msra.mxu0 0.0
    %445 = vmatprep.subr.mxu0 0.0
    %446 = vmatpush1.msra.mxu0 0.0
    %447 = vmatprep.subr.mxu0 0.0
    %448 = vmatpush1.msra.mxu0 0.0
    %449 = vmatprep.subr.mxu0 0.0
    %450 = vmatpush1.msra.mxu0 0.0
    %451 = vmatprep.subr.mxu0 0.0
    %452 = vmatpush1.msra.mxu0 0.0
    %453 = vmatprep.subr.mxu0 0.0
    %454 = vmatpush1.msra.mxu0 0.0
    %455 = vmatprep.subr.mxu0 0.0
    %456 = vmatpush1.msra.mxu0 0.0
    %457 = vmatprep.subr.mxu0 0.0
    %458 = vmatpush1.msra.mxu0 0.0
    %459 = vmatprep.subr.mxu0 0.0
    %460 = vmatpush1.msra.mxu0 0.0
    %461 = vmatprep.subr.mxu0 0.0
    %462 = vmatpush1.msra.mxu0 0.0
    %463 = vmatprep.subr.mxu0 0.0
    %464 = vmatpush1.msra.mxu0 0.0
    %465 = vmatprep.subr.mxu0 0.0
    %466 = vmatpush1.msra.mxu0 0.0
    %467 = vmatprep.subr.mxu0 0.0
    %468 = vmatpush1.msra.mxu0 0.0
    %469 = vmatprep.subr.mxu0 %v369
    %470 = vmatpush1.msra.mxu0 %v368
    %471 = vmatprep.subr.mxu0 %v365
    %472 = vmatpush1.msra.mxu0 %v364
    %473 = vmatprep.subr.mxu0 0.0
    %474 = vmatpush2.msra.mxu0 0.0
    %475 = vmatprep.subr.mxu0 0.0
    %476 = vmatpush2.msra.mxu0 0.0
    %477 = vmatprep.subr.mxu0 0.0
    %478 = vmatpush2.msra.mxu0 0.0
    %479 = vmatprep.subr.mxu0 0.0
    %480 = vmatpush2.msra.mxu0 0.0
    %481 = vmatprep.subr.mxu0 0.0
    %482 = vmatpush2.msra.mxu0 0.0
    %483 = vmatprep.subr.mxu0 0.0
    %484 = vmatpush2.msra.mxu0 0.0
    %485 = vmatprep.subr.mxu0 0.0
    %486 = vmatpush2.msra.mxu0 0.0
    %487 = vmatprep.subr.mxu0 0.0
    %488 = vmatpush2.msra.mxu0 0.0
    %489 = vmatprep.subr.mxu0 0.0
    %490 = vmatpush2.msra.mxu0 0.0
    %491 = vmatprep.subr.mxu0 0.0
    %492 = vmatpush2.msra.mxu0 0.0
    %493 = vmatprep.subr.mxu0 0.0
    %494 = vmatpush2.msra.mxu0 0.0
    %495 = vmatprep.subr.mxu0 0.0
    %496 = vmatpush2.msra.mxu0 0.0
    %497 = vmatprep.subr.mxu0 0.0
    %498 = vmatpush2.msra.mxu0 0.0
    %499 = vmatprep.subr.mxu0 0.0
    %500 = vmatpush2.msra.mxu0 0.0
    %501 = vmatprep.subr.mxu0 0.0
    %502 = vmatpush2.msra.mxu0 0.0
    %503 = vmatprep.subr.mxu0 0.0
    %504 = vmatpush2.msra.mxu0 0.0
    %505 = vmatprep.mubr.f32.mxu0 0.0
    %506 = vmatmul.mubr.f32.gmra.mxu0 %v218
    %v507 = vpop.f32.mrf.mxu0
    %v508 = vadd.f32 0.0, %v507
    %v509 = vpop.f32.mrf.mxu0
    %v510 = vadd.f32 0.0, %v509
    %511 = vdwg.mxu0
    %v512 = vadd.f32 %v287, %v437
    %v513 = vadd.f32 %v289, %v439
    %v514 = vadd.f32 %v358, %v508
    %v515 = vadd.f32 %v360, %v510
    %v516 = vld [vmem:[%s3] sm:$0xf]
    %v518 = vlaneseq
    %v519 = vshrl.u32 %v518, 7
    %v520 = vsub.s32 0, %v519
    %v521 = vrot.slane %v516, %v520
    %v522 = vlaneseq
    %v523 = vshrl.u32 %v522, 7
    %v524 = vsub.s32 1, %v523
    %v525 = vrot.slane %v516, %v524
    %v526 = vlaneseq
    %v527 = vshrl.u32 %v526, 7
    %v528 = vsub.s32 2, %v527
    %v529 = vrot.slane %v516, %v528
    %v530 = vlaneseq
    %v531 = vshrl.u32 %v530, 7
    %v532 = vsub.s32 3, %v531
    %v533 = vrot.slane %v516, %v532
    %v538 = vadd.f32 %v512, %v521
    %v539 = vadd.f32 %v513, %v525
    %v540 = vadd.f32 %v514, %v529
    %v541 = vadd.f32 %v515, %v533
    %v546 = vcombine.low %v538, %v539
    %v547 = vcombine.high %v538, %v539
    %v548 = vcombine.low %v540, %v541
    %v549 = vcombine.high %v540, %v541
    %v551 = vunpack.c.l.s4 1983009808
    %v552 = vunpack.c.0.s8 %v551
    %v553 = vlaneseq
    %v554 = vshrl.u32 %v553, 7
    %v555 = vsub.s32 %v552, %v554
    %v556 = vrot.slane %v546, %v555
    %v558 = vunpack.c.l.s4 1983009808
    %v559 = vunpack.c.0.s8 %v558
    %v560 = vlaneseq
    %v561 = vshrl.u32 %v560, 7
    %v562 = vsub.s32 %v559, %v561
    %v563 = vrot.slane %v547, %v562
    %v565 = vunpack.c.l.s4 1983009808
    %v566 = vunpack.c.0.s8 %v565
    %v567 = vlaneseq
    %v568 = vshrl.u32 %v567, 7
    %v569 = vsub.s32 %v566, %v568
    %v570 = vrot.slane %v548, %v569
    %v572 = vunpack.c.l.s4 1983009808
    %v573 = vunpack.c.0.s8 %v572
    %v574 = vlaneseq
    %v575 = vshrl.u32 %v574, 7
    %v576 = vsub.s32 %v573, %v575
    %v577 = vrot.slane %v549, %v576
    %v578 = vcombine.low %v556, %v570
    %v579 = vcombine.high %v556, %v570
    %v580 = vcombine.low %v563, %v577
    %v581 = vcombine.high %v563, %v577
    %586 = vst [vmem:[#allocation8] sm:$0xff] %v578
    %587 = vst [vmem:[#allocation8 + $0x8] sm:$0xff] %v579
    %588 = vst [vmem:[#allocation8 + $0x10] sm:$0xff] %v580
    %589 = vst [vmem:[#allocation8 + $0x18] sm:$0xff] %v581
    // Predicated region
    $region30: #{tpu_custom_call.1} parent=1 // pred_check
      _
    $region31: #{tpu_custom_call.1} parent=1 // pred_check_branch
      %591 = sbr.rel (0) target = $region33
    $region32: #{tpu_custom_call.1} parent=1 // pred_region
      %s593 = ssub.s32 512, 128
      %594 = vsyncadd [#allocation4], %s593
      %s595 = sshll.u32 [#allocation8], 4
      %s596 = int_to_ptr.vmem [resolvable:$true] %s595
      %601 = dma.vmem_to_hbm [thread:$0]  %s596, 128, %s4, [#allocation4], 128, 128, 8
    $region33: #{tpu_custom_call.1} parent=1 // pred_fallthru
      _
    // Predicated region
    $region34: #{tpu_custom_call.1} parent=1 // pred_check
      _
    $region35: #{tpu_custom_call.1} parent=1 // pred_check_branch
      %603 = sbr.rel (0) target = $region37
    $region36: #{tpu_custom_call.1} parent=1 // pred_region
      %604 = dma.done [#allocation4], 512
    $region37: #{tpu_custom_call.1} parent=1 // pred_fallthru
      _
    %605 = vsyncpa [#allocation3], 1
    %606 = vsyncpa [#allocation6], 1
    %607 = vsyncpa [#allocation4], 1

</llo_original>
